<compile_context>
chip_gen: v6e
topology: v6e:2x2x1
jax: 0.10.0
libtpu: 0.0.40
codegen_flags: <defaults>
</compile_context>

<pallas_src>
import functools

import jax
import jax.numpy as jnp
import numpy as np
from jax.experimental import pallas as pl
from jax.experimental.pallas import tpu as pltpu

LOG_SQRT_2PI = 0.5 * float(np.log(2.0 * np.pi))

OUT_ROWS = 2   # packed output rows: [log_prob, value]
P_COLS = 8     # columns of the packed small-parameter slab


def _round_up(n, m):
    return ((n + m - 1) // m) * m


def _block_diag(a, b):
    r1, c1 = a.shape
    r2, c2 = b.shape
    top = jnp.concatenate([a, jnp.zeros((r1, c2), a.dtype)], axis=1)
    bot = jnp.concatenate([jnp.zeros((r2, c1), a.dtype), b], axis=1)
    return jnp.concatenate([top, bot], axis=0)


# ------------------------------- kernel ---------------------------------------

def _agent_kernel(xa_ref, w1_ref, w2_ref, w3_ref, p_ref, out_ref,
                  *, obs_rows, act_dim, h1f, h2f, w3n):
    p = p_ref[...]                                   # (p_rows, P_COLS) packed params
    b1 = p[:h1f, 0:1]                                # fused layer-1 bias (column)
    b2 = p[:h2f, 1:2]                                # fused layer-2 bias
    b3 = p[:w3n, 2:3]                                # fused layer-3 bias
    inv_two_var = p[:act_dim, 3:4]                   # 0.5 * exp(-2*logstd)
    scale_w = p[:act_dim, 4:5]
    scale_b = p[:act_dim, 5:6]
    logp_const = p[0:1, 6:7]                         # sum(logstd + 0.5*log(2*pi))

    xa = xa_ref[...]                                 # (obs_rows + act_dim, tb)
    x = xa[:obs_rows, :]                             # obs (zero-padded rows folded
                                                     #  into zero W1 columns)
    a = xa[obs_rows:obs_rows + act_dim, :]           # action

    # Fused actor+critic MLP, transposed (features on sublanes, batch on lanes).
    h = jnp.tanh(jnp.dot(w1_ref[...], x, preferred_element_type=jnp.float32) + b1)
    h = jnp.tanh(jnp.dot(w2_ref[...], h, preferred_element_type=jnp.float32) + b2)
    o3 = jnp.dot(w3_ref[...], h, preferred_element_type=jnp.float32) + b3

    mean = jnp.tanh(o3[:act_dim, :])                 # actor mean (final Tanh)
    value = o3[act_dim:act_dim + 1, :]               # critic value (no Tanh)

    # Normal log-prob of the scaled action (divide replaced by precomputed multiply).
    a_scaled = a * scale_w + scale_b
    diff = a_scaled - mean
    log_prob = -jnp.sum(diff * diff * inv_two_var, axis=0, keepdims=True) - logp_const

    out_ref[0:1, :] = log_prob                       # direct row stores, no pad lanes
    out_ref[1:2, :] = value


# ------------------------------ wrapper ----------------------------------------

def fuse_params(p):
    """Fuse actor/critic weights (transposed) and pack small params into one slab."""
    obs_dim, h1 = p["aw1"].shape
    h2 = p["aw2"].shape[1]
    act_dim = p["aw3"].shape[1]
    h1f, h2f = 2 * h1, 2 * h2
    w3n = _round_up(act_dim + 1, 8)
    obs_rows = _round_up(obs_dim, 8)
    p_rows = _round_up(max(h1f, h2f, w3n, act_dim), 8)

    # Transposed fused weights (output features on rows -> sublanes in the kernel).
    w1t = jnp.concatenate([p["aw1"], p["cw1"]], axis=1).T               # (h1f, obs)
    w1t = jnp.pad(w1t, ((0, 0), (0, obs_rows - obs_dim)))               # (h1f, obs_rows)
    w2t = _block_diag(p["aw2"], p["cw2"]).T                             # (h2f, h1f)
    w3t = _block_diag(p["aw3"], p["cw3"]).T                             # (act+1, h2f)
    w3t = jnp.pad(w3t, ((0, w3n - (act_dim + 1)), (0, 0)))              # (w3n, h2f)

    def col(v):
        v = jnp.asarray(v, jnp.float32).reshape(-1)
        return jnp.pad(v, (0, p_rows - v.shape[0])).reshape(p_rows, 1)

    logstd = p["logstd"]
    inv_two_var = 0.5 * jnp.exp(-2.0 * logstd)
    ent_sum = jnp.sum(0.5 + LOG_SQRT_2PI + logstd)          # batch-independent entropy
    logp_const = jnp.sum(logstd + LOG_SQRT_2PI)

    slab = jnp.concatenate([
        col(jnp.concatenate([p["ab1"], p["cb1"]], axis=1)),   # col 0: fused b1
        col(jnp.concatenate([p["ab2"], p["cb2"]], axis=1)),   # col 1: fused b2
        col(jnp.concatenate([p["ab3"], p["cb3"]], axis=1)),   # col 2: fused b3
        col(inv_two_var),                                     # col 3
        col(p["scale_w"]),                                    # col 4
        col(p["scale_b"]),                                    # col 5
        col(logp_const.reshape(1)),                           # col 6: scalar
        jnp.zeros((p_rows, P_COLS - 7), jnp.float32),         # col 7: pad
    ], axis=1)

    dims = dict(obs_dim=obs_dim, obs_rows=obs_rows, act_dim=act_dim,
                h1f=h1f, h2f=h2f, w3n=w3n, p_rows=p_rows)
    return (w1t, w2t, w3t, slab), ent_sum, dims


def agent_forward(x, action, params, *, block_b=4096):
    """Returns (action, log_prob, entropy, value) matching Agent.forward(x, action)."""
    (w1t, w2t, w3t, slab), ent_sum, d = fuse_params(params)
    B, obs_dim = x.shape
    act_dim = d["act_dim"]
    obs_rows = d["obs_rows"]
    in_rows = obs_rows + act_dim

    # Batch is the lane dimension: tile must be a multiple of 128.
    tb = _round_up(min(block_b, _round_up(B, 128)), 128)
    b_pad = _round_up(B, tb)
    # v7x: keep at least a 2-step "parallel" grid when the batch is big enough
    # so work shards across both TensorCores (no effect on v5e/v6e).
    if b_pad == tb and b_pad % 256 == 0:
        tb = b_pad // 2

    # Fused transposed input slab: rows [0:obs_dim] = x^T, [obs_rows:] = action^T.
    xa = jnp.zeros((in_rows, b_pad), jnp.float32)
    xa = xa.at[:obs_dim, :B].set(x.T.astype(jnp.float32))
    xa = xa.at[obs_rows:in_rows, :B].set(action.T.astype(jnp.float32))

    kernel = functools.partial(
        _agent_kernel, obs_rows=obs_rows, act_dim=act_dim,
        h1f=d["h1f"], h2f=d["h2f"], w3n=d["w3n"])

    flops = 2 * b_pad * (obs_rows * d["h1f"] + d["h1f"] * d["h2f"] + d["h2f"] * d["w3n"])
    transcendentals = b_pad * (d["h1f"] + d["h2f"] + act_dim)
    bytes_accessed = 4 * (b_pad * (in_rows + OUT_ROWS)
                          + w1t.size + w2t.size + w3t.size + slab.size)

    out = pl.pallas_call(
        kernel,
        out_shape=jax.ShapeDtypeStruct((OUT_ROWS, b_pad), jnp.float32),
        grid=(b_pad // tb,),
        in_specs=[
            pl.BlockSpec((in_rows, tb), lambda i: (0, i)),            # fused x|action tile
            pl.BlockSpec((d["h1f"], obs_rows), lambda i: (0, 0)),     # fused W1^T (resident)
            pl.BlockSpec((d["h2f"], d["h1f"]), lambda i: (0, 0)),     # fused W2^T (resident)
            pl.BlockSpec((d["w3n"], d["h2f"]), lambda i: (0, 0)),     # fused W3^T (resident)
            pl.BlockSpec((d["p_rows"], P_COLS), lambda i: (0, 0)),    # packed small params
        ],
        out_specs=pl.BlockSpec((OUT_ROWS, tb), lambda i: (0, i)),
        compiler_params=pltpu.CompilerParams(dimension_semantics=("parallel",)),
        cost_estimate=pl.CostEstimate(flops=flops, transcendentals=transcendentals,
                                      bytes_accessed=bytes_accessed),
    )(xa, w1t, w2t, w3t, slab)

    log_prob = out[0, :B].reshape(B, 1)
    value = out[1, :B].reshape(B, 1)
    entropy = jnp.full((B, 1), ent_sum, jnp.float32)   # batch-independent, done host-side
    return action, log_prob, entropy, value


# ------------------------- deterministic parameter init -------------------------

def _orthogonal(key, out_dim, in_dim, std):
    """torch.nn.init.orthogonal_ equivalent for a (out_dim, in_dim) weight, scaled by std."""
    a = jax.random.normal(key, (out_dim, in_dim) if out_dim >= in_dim else (in_dim, out_dim),
                          dtype=jnp.float32)
    q, r = jnp.linalg.qr(a)
    q = q * jnp.sign(jnp.diagonal(r))
    if out_dim < in_dim:
        q = q.T
    return (std * q[:out_dim, :in_dim]).astype(jnp.float32)


def make_params(key, obs_dim, act_dim, hidden_dims, action_low, action_high):
    ks = jax.random.split(key, 6)
    h1, h2 = hidden_dims
    sqrt2 = float(np.sqrt(2.0))

    aw1 = _orthogonal(ks[0], h1, obs_dim, sqrt2).T          # (obs, h1)
    aw2 = _orthogonal(ks[1], h2, h1, sqrt2).T               # (h1, h2)
    aw3 = _orthogonal(ks[2], act_dim, h2, 0.01).T           # (h2, act)
    cw1 = _orthogonal(ks[3], h1, obs_dim, sqrt2).T
    cw2 = _orthogonal(ks[4], h2, h1, sqrt2).T
    cw3 = _orthogonal(ks[5], 1, h2, 1.0).T                  # (h2, 1)

    low = jnp.asarray(action_low, jnp.float32).reshape(1, act_dim)
    high = jnp.asarray(action_high, jnp.float32).reshape(1, act_dim)
    rng = high - low
    _rng = 2.0  # _max - _min = 1 - (-1)
    scale_w = _rng / rng
    scale_b = -low * _rng / rng + (-1.0)

    return dict(
        aw1=aw1, ab1=jnp.zeros((1, h1), jnp.float32),
        aw2=aw2, ab2=jnp.zeros((1, h2), jnp.float32),
        aw3=aw3, ab3=jnp.zeros((1, act_dim), jnp.float32),
        logstd=jnp.zeros((1, act_dim), jnp.float32),
        cw1=cw1, cb1=jnp.zeros((1, h1), jnp.float32),
        cw2=cw2, cb2=jnp.zeros((1, h2), jnp.float32),
        cw3=cw3, cb3=jnp.zeros((1, 1), jnp.float32),
        scale_w=scale_w, scale_b=scale_b,
    )


# ------------------------------ pure-JAX reference ------------------------------

def reference_forward(x, action, p):
    h = jnp.tanh(x @ p["aw1"] + p["ab1"])
    h = jnp.tanh(h @ p["aw2"] + p["ab2"])
    mean = jnp.tanh(h @ p["aw3"] + p["ab3"])
    logstd = p["logstd"]
    std = jnp.exp(logstd)
    a_scaled = action * p["scale_w"] + p["scale_b"]
    logp = (-((a_scaled - mean) ** 2) / (2 * std * std) - logstd - LOG_SQRT_2PI)
    log_prob = logp.sum(-1, keepdims=True)
    ent = (0.5 + LOG_SQRT_2PI + jnp.broadcast_to(logstd, mean.shape)).sum(-1, keepdims=True)
    v = jnp.tanh(x @ p["cw1"] + p["cb1"])
    v = jnp.tanh(v @ p["cw2"] + p["cb2"])
    value = v @ p["cw3"] + p["cb3"]
    return action, log_prob, ent, value


if __name__ == "__main__":
    key = jax.random.PRNGKey(0)
    k_param, k_x, k_a, k_x2, k_a2 = jax.random.split(key, 5)

    obs_dim, act_dim = 8, 4
    hidden_dims = (32, 64)
    action_low = -2.0 * np.ones(act_dim, np.float32)
    action_high = 2.0 * np.ones(act_dim, np.float32)
    params = make_params(k_param, obs_dim, act_dim, hidden_dims, action_low, action_high)

    # Small single-tile case (batch padded up to one 128-lane tile).
    x = jax.random.normal(k_x, (8, obs_dim), jnp.float32)
    action = jax.random.uniform(k_a, (8, act_dim), jnp.float32, minval=-2.0, maxval=2.0)
    out = jax.block_until_ready(agent_forward(x, action, params))
    ref = reference_forward(x, action, params)
    for o, r in zip(out, ref):
        np.testing.assert_allclose(np.asarray(o), np.asarray(r), rtol=1e-5, atol=1e-5)

    # Multi-tile case (exercises the batch grid + padding path).
    x2 = jax.random.normal(k_x2, (200, obs_dim), jnp.float32)
    action2 = jax.random.uniform(k_a2, (200, act_dim), jnp.float32, minval=-2.0, maxval=2.0)
    out2 = jax.block_until_ready(agent_forward(x2, action2, params, block_b=128))
    ref2 = reference_forward(x2, action2, params)
    for o, r in zip(out2, ref2):
        np.testing.assert_allclose(np.asarray(o), np.asarray(r), rtol=1e-5, atol=1e-5)

    print("KERNEL_OK")
</pallas_src>

<mosaic_0001>
module attributes {stable_mosaic.version = 11 : i64} {
  func.func @_agent_kernel(%arg0: i32, %arg1: memref<12x128xf32, #tpu.memory_space<vmem>>, %arg2: memref<64x8xf32, #tpu.memory_space<vmem>>, %arg3: memref<128x64xf32, #tpu.memory_space<vmem>>, %arg4: memref<8x128xf32, #tpu.memory_space<vmem>>, %arg5: memref<128x8xf32, #tpu.memory_space<vmem>>, %arg6: memref<2x128xf32, #tpu.memory_space<vmem>>) attributes {dimension_semantics = [#tpu.dimension_semantics<parallel>], iteration_bounds = array<i64: 1>, scalar_prefetch = 0 : i64, scratch_operands = 0 : i64, tpu.core_type = #tpu.core_type<tc>, window_params = [{transform_indices = @transform_0, window_bounds = array<i64: 12, 128>}, {pipeline_mode = #tpu.pipeline_mode<synchronous>, transform_indices = @transform_1, window_bounds = array<i64: 64, 8>}, {pipeline_mode = #tpu.pipeline_mode<synchronous>, transform_indices = @transform_2, window_bounds = array<i64: 128, 64>}, {pipeline_mode = #tpu.pipeline_mode<synchronous>, transform_indices = @transform_3, window_bounds = array<i64: 8, 128>}, {pipeline_mode = #tpu.pipeline_mode<synchronous>, transform_indices = @transform_4, window_bounds = array<i64: 128, 8>}, {transform_indices = @transform_5, window_bounds = array<i64: 2, 128>}]} {
    %c0 = arith.constant 0 : index
    %c0_0 = arith.constant 0 : index
    %0 = vector.load %arg5[%c0, %c0_0] : memref<128x8xf32, #tpu.memory_space<vmem>>, vector<128x8xf32>
    %1 = vector.extract_strided_slice %0 {offsets = [0, 0], sizes = [64, 1], strides = [1, 1]} : vector<128x8xf32> to vector<64x1xf32>
    %2 = vector.extract_strided_slice %0 {offsets = [0, 1], sizes = [128, 1], strides = [1, 1]} : vector<128x8xf32> to vector<128x1xf32>
    %3 = vector.extract_strided_slice %0 {offsets = [0, 2], sizes = [8, 1], strides = [1, 1]} : vector<128x8xf32> to vector<8x1xf32>
    %4 = vector.extract_strided_slice %0 {offsets = [0, 3], sizes = [4, 1], strides = [1, 1]} : vector<128x8xf32> to vector<4x1xf32>
    %5 = vector.extract_strided_slice %0 {offsets = [0, 4], sizes = [4, 1], strides = [1, 1]} : vector<128x8xf32> to vector<4x1xf32>
    %6 = vector.extract_strided_slice %0 {offsets = [0, 5], sizes = [4, 1], strides = [1, 1]} : vector<128x8xf32> to vector<4x1xf32>
    %7 = vector.extract_strided_slice %0 {offsets = [0, 6], sizes = [1, 1], strides = [1, 1]} : vector<128x8xf32> to vector<1x1xf32>
    %c0_1 = arith.constant 0 : index
    %c0_2 = arith.constant 0 : index
    %8 = vector.load %arg1[%c0_1, %c0_2] : memref<12x128xf32, #tpu.memory_space<vmem>>, vector<12x128xf32>
    %9 = vector.extract_strided_slice %8 {offsets = [0, 0], sizes = [8, 128], strides = [1, 1]} : vector<12x128xf32> to vector<8x128xf32>
    %10 = vector.extract_strided_slice %8 {offsets = [8, 0], sizes = [4, 128], strides = [1, 1]} : vector<12x128xf32> to vector<4x128xf32>
    %c0_3 = arith.constant 0 : index
    %c0_4 = arith.constant 0 : index
    %11 = vector.load %arg2[%c0_3, %c0_4] : memref<64x8xf32, #tpu.memory_space<vmem>>, vector<64x8xf32>
    %cst = arith.constant dense<0.000000e+00> : vector<64x128xf32>
    %12 = tpu.matmul %11, %9, %cst {dimension_numbers = #tpu.dot_dimension_numbers<[1], [0], [0], [1], [0, 0, 1, 1], [], []>} : vector<64x8xf32>, vector<8x128xf32>, vector<64x128xf32> -> vector<64x128xf32>
    %13 = vector.broadcast %1 : vector<64x1xf32> to vector<64x128xf32>
    %14 = arith.addf %12, %13 : vector<64x128xf32>
    %15 = math.tanh %14 : vector<64x128xf32>
    %c0_5 = arith.constant 0 : index
    %c0_6 = arith.constant 0 : index
    %16 = vector.load %arg3[%c0_5, %c0_6] : memref<128x64xf32, #tpu.memory_space<vmem>>, vector<128x64xf32>
    %cst_7 = arith.constant dense<0.000000e+00> : vector<128x128xf32>
    %17 = tpu.matmul %16, %15, %cst_7 {dimension_numbers = #tpu.dot_dimension_numbers<[1], [0], [0], [1], [0, 0, 1, 1], [], []>} : vector<128x64xf32>, vector<64x128xf32>, vector<128x128xf32> -> vector<128x128xf32>
    %18 = vector.broadcast %2 : vector<128x1xf32> to vector<128x128xf32>
    %19 = arith.addf %17, %18 : vector<128x128xf32>
    %20 = math.tanh %19 : vector<128x128xf32>
    %c0_8 = arith.constant 0 : index
    %c0_9 = arith.constant 0 : index
    %21 = vector.load %arg4[%c0_8, %c0_9] : memref<8x128xf32, #tpu.memory_space<vmem>>, vector<8x128xf32>
    %cst_10 = arith.constant dense<0.000000e+00> : vector<8x128xf32>
    %22 = tpu.matmul %21, %20, %cst_10 {dimension_numbers = #tpu.dot_dimension_numbers<[1], [0], [0], [1], [0, 0, 1, 1], [], []>} : vector<8x128xf32>, vector<128x128xf32>, vector<8x128xf32> -> vector<8x128xf32>
    %23 = vector.broadcast %3 : vector<8x1xf32> to vector<8x128xf32>
    %24 = arith.addf %22, %23 : vector<8x128xf32>
    %25 = vector.extract_strided_slice %24 {offsets = [0, 0], sizes = [4, 128], strides = [1, 1]} : vector<8x128xf32> to vector<4x128xf32>
    %26 = math.tanh %25 : vector<4x128xf32>
    %27 = vector.extract_strided_slice %24 {offsets = [4, 0], sizes = [1, 128], strides = [1, 1]} : vector<8x128xf32> to vector<1x128xf32>
    %28 = vector.broadcast %5 : vector<4x1xf32> to vector<4x128xf32>
    %29 = arith.mulf %10, %28 : vector<4x128xf32>
    %30 = vector.broadcast %6 : vector<4x1xf32> to vector<4x128xf32>
    %31 = arith.addf %29, %30 : vector<4x128xf32>
    %32 = arith.subf %31, %26 : vector<4x128xf32>
    %33 = arith.mulf %32, %32 : vector<4x128xf32>
    %34 = vector.broadcast %4 : vector<4x1xf32> to vector<4x128xf32>
    %35 = arith.mulf %33, %34 : vector<4x128xf32>
    %cst_11 = arith.constant dense<0.000000e+00> : vector<128xf32>
    %36 = vector.multi_reduction <add>, %35, %cst_11 [0] : vector<4x128xf32> to vector<128xf32>
    %37 = vector.shape_cast %36 : vector<128xf32> to vector<1x128xf32>
    %cst_12 = arith.constant 0.000000e+00 : f32
    %38 = vector.broadcast %cst_12 : f32 to vector<1x128xf32>
    %39 = arith.subf %38, %37 : vector<1x128xf32>
    %40 = vector.broadcast %7 : vector<1x1xf32> to vector<1x128xf32>
    %41 = arith.subf %39, %40 : vector<1x128xf32>
    %c0_13 = arith.constant 0 : index
    %c0_14 = arith.constant 0 : index
    %42 = vector.load %arg6[%c0_13, %c0_14] : memref<2x128xf32, #tpu.memory_space<vmem>>, vector<1x128xf32>
    tpu.vector_store %arg6[%c0_13, %c0_14], %41 {strides = array<i32>} : memref<2x128xf32, #tpu.memory_space<vmem>>, vector<1x128xf32>,
    %c1 = arith.constant 1 : index
    %c0_15 = arith.constant 0 : index
    %43 = vector.load %arg6[%c1, %c0_15] : memref<2x128xf32, #tpu.memory_space<vmem>>, vector<1x128xf32>
    tpu.vector_store %arg6[%c1, %c0_15], %27 {strides = array<i32>} : memref<2x128xf32, #tpu.memory_space<vmem>>, vector<1x128xf32>,
    return
  }
  func.func @transform_0(%arg0: i32) -> (i32, i32) {
    %c0_i32 = arith.constant 0 : i32
    %c0_i32_0 = arith.constant 0 : i32
    return %c0_i32, %arg0 : i32, i32
  }
  func.func @transform_1(%arg0: i32) -> (i32, i32) {
    %c0_i32 = arith.constant 0 : i32
    %c0_i32_0 = arith.constant 0 : i32
    %c0_i32_1 = arith.constant 0 : i32
    return %c0_i32, %c0_i32_0 : i32, i32
  }
  func.func @transform_2(%arg0: i32) -> (i32, i32) {
    %c0_i32 = arith.constant 0 : i32
    %c0_i32_0 = arith.constant 0 : i32
    %c0_i32_1 = arith.constant 0 : i32
    return %c0_i32, %c0_i32_0 : i32, i32
  }
  func.func @transform_3(%arg0: i32) -> (i32, i32) {
    %c0_i32 = arith.constant 0 : i32
    %c0_i32_0 = arith.constant 0 : i32
    %c0_i32_1 = arith.constant 0 : i32
    return %c0_i32, %c0_i32_0 : i32, i32
  }
  func.func @transform_4(%arg0: i32) -> (i32, i32) {
    %c0_i32 = arith.constant 0 : i32
    %c0_i32_0 = arith.constant 0 : i32
    %c0_i32_1 = arith.constant 0 : i32
    return %c0_i32, %c0_i32_0 : i32, i32
  }
  func.func @transform_5(%arg0: i32) -> (i32, i32) {
    %c0_i32 = arith.constant 0 : i32
    %c0_i32_0 = arith.constant 0 : i32
    return %c0_i32, %arg0 : i32, i32
  }
}

</mosaic_0001>

<llo_original>
// kernel: tpu_custom_call.1
$region0: #{tpu_custom_call.1}
  #allocation0 [shape = 'u32[]', space=smem, size = 0x4, offset = 0x4, fixed_abs, tag = 'smem constant byte address 0x4 - core index']
  #allocation1 [shape = 'u32[144,128]{1,0:T(1,128)}', space=vmem, size = 0x12000, scoped, tag = 'internal scratch']
  %s0 = inlined_call_operand.vmem [shape: f32[12,128], index: 0, kind: input, shape index: {}]
  %s1 = inlined_call_operand.vmem [shape: f32[64,8], index: 1, kind: input, shape index: {}]
  %s2 = inlined_call_operand.vmem [shape: f32[128,64], index: 2, kind: input, shape index: {}]
  %s3 = inlined_call_operand.vmem [shape: f32[8,128], index: 3, kind: input, shape index: {}]
  %s4 = inlined_call_operand.vmem [shape: f32[128,8], index: 4, kind: input, shape index: {}]
  %s5 = inlined_call_operand.hbm [shape: f32[2,128], index: 5, kind: output, shape index: {}]
  %s6 = sld [smem:[#allocation0]]
  $region30: #{tpu_custom_call.1} parent=0
    _
  %s8 = ssub.s32 1, %s6
  %s9 = scalar_select 0, %s8, %s6
  $region1: #{tpu_custom_call.1} parent=0
    #allocation2 [shape = 'u8[1024]{0}', space=vmem, size = 0x400, scoped, tag = 'output window, operand 0, single buffered']
    #allocation3 [shape = 's32[1]{0}', space=sflag, size = 0x4, scoped, tag = 'scoped memory for tpu_custom_call.1']
    %10 = vsyncpa [#allocation3], 0
    // Predicated region
    $region2: #{tpu_custom_call.1} parent=1 // pred_check
      _
    $region3: #{tpu_custom_call.1} parent=1 // pred_check_branch
      %12 = sbr.rel (0) target = $region5
    $region4: #{tpu_custom_call.1} parent=1 // pred_region
      _
    $region5: #{tpu_custom_call.1} parent=1 // pred_fallthru
      _
    // Predicated region
    $region6: #{tpu_custom_call.1} parent=1 // pred_check
      _
    $region7: #{tpu_custom_call.1} parent=1 // pred_check_branch
      %14 = sbr.rel (0) target = $region9
    $region8: #{tpu_custom_call.1} parent=1 // pred_region
      _
    $region9: #{tpu_custom_call.1} parent=1 // pred_fallthru
      _
    // Predicated region
    $region10: #{tpu_custom_call.1} parent=1 // pred_check
      _
    $region11: #{tpu_custom_call.1} parent=1 // pred_check_branch
      %16 = sbr.rel (0) target = $region13
    $region12: #{tpu_custom_call.1} parent=1 // pred_region
      _
    $region13: #{tpu_custom_call.1} parent=1 // pred_fallthru
      _
    // Predicated region
    $region14: #{tpu_custom_call.1} parent=1 // pred_check
      _
    $region15: #{tpu_custom_call.1} parent=1 // pred_check_branch
      %18 = sbr.rel (0) target = $region17
    $region16: #{tpu_custom_call.1} parent=1 // pred_region
      _
    $region17: #{tpu_custom_call.1} parent=1 // pred_fallthru
      _
    // Predicated region
    $region18: #{tpu_custom_call.1} parent=1 // pred_check
      _
    $region19: #{tpu_custom_call.1} parent=1 // pred_check_branch
      %20 = sbr.rel (0) target = $region21
    $region20: #{tpu_custom_call.1} parent=1 // pred_region
      _
    $region21: #{tpu_custom_call.1} parent=1 // pred_fallthru
      _
    %v21 = vld [vmem:[%s4] sm:$0xff]
    %v22 = vld [vmem:[%s4 + $0x8] sm:$0xff]
    %v23 = vld [vmem:[%s4 + $0x10] sm:$0xff]
    %v24 = vld [vmem:[%s4 + $0x18] sm:$0xff]
    %v25 = vld [vmem:[%s4 + $0x20] sm:$0xff]
    %v26 = vld [vmem:[%s4 + $0x28] sm:$0xff]
    %v27 = vld [vmem:[%s4 + $0x30] sm:$0xff]
    %v28 = vld [vmem:[%s4 + $0x38] sm:$0xff]
    %v29 = vld [vmem:[%s4 + $0x40] sm:$0xff]
    %v30 = vld [vmem:[%s4 + $0x48] sm:$0xff]
    %v31 = vld [vmem:[%s4 + $0x50] sm:$0xff]
    %v32 = vld [vmem:[%s4 + $0x58] sm:$0xff]
    %v33 = vld [vmem:[%s4 + $0x60] sm:$0xff]
    %v34 = vld [vmem:[%s4 + $0x68] sm:$0xff]
    %v35 = vld [vmem:[%s4 + $0x70] sm:$0xff]
    %v36 = vld [vmem:[%s4 + $0x78] sm:$0xff]
    %v37 = vld [vmem:[%s0] sm:$0xff]
    %v38 = vld [vmem:[%s0 + $0x8] sm:$0xf]
    %v39 = vld [vmem:[%s1] sm:$0xff]
    %v40 = vld [vmem:[%s1 + $0x8] sm:$0xff]
    %v41 = vld [vmem:[%s1 + $0x10] sm:$0xff]
    %v42 = vld [vmem:[%s1 + $0x18] sm:$0xff]
    %v43 = vld [vmem:[%s1 + $0x20] sm:$0xff]
    %v44 = vld [vmem:[%s1 + $0x28] sm:$0xff]
    %v45 = vld [vmem:[%s1 + $0x30] sm:$0xff]
    %v46 = vld [vmem:[%s1 + $0x38] sm:$0xff]
    %48 = vset.pattern.permute.xlu0 0
    %49 = vperm.xlu0 %48, %v21
    %v50 = vpop.permute.xlu0 %49
    %53 = vset.pattern.permute.xlu0 0
    %54 = vperm.xlu0 %53, %v22
    %v55 = vpop.permute.xlu0 %54
    %58 = vset.pattern.permute.xlu0 0
    %59 = vperm.xlu0 %58, %v23
    %v60 = vpop.permute.xlu0 %59
    %63 = vset.pattern.permute.xlu0 0
    %64 = vperm.xlu0 %63, %v24
    %v65 = vpop.permute.xlu0 %64
    %68 = vset.pattern.permute.xlu0 0
    %69 = vperm.xlu0 %68, %v25
    %v70 = vpop.permute.xlu0 %69
    %73 = vset.pattern.permute.xlu0 0
    %74 = vperm.xlu0 %73, %v26
    %v75 = vpop.permute.xlu0 %74
    %78 = vset.pattern.permute.xlu0 0
    %79 = vperm.xlu0 %78, %v27
    %v80 = vpop.permute.xlu0 %79
    %83 = vset.pattern.permute.xlu0 0
    %84 = vperm.xlu0 %83, %v28
    %v85 = vpop.permute.xlu0 %84
    %vm87 = vcmask 64512
    %v89 = vsel %vm87, %v39, 0
    %v92 = vsel %vm87, %v40, 0
    %v95 = vsel %vm87, %v41, 0
    %v98 = vsel %vm87, %v42, 0
    %v101 = vsel %vm87, %v43, 0
    %v104 = vsel %vm87, %v44, 0
    %v107 = vsel %vm87, %v45, 0
    %v110 = vsel %vm87, %v46, 0
    %112 = vmatprep.subr.mxu0 0.0
    %113 = vmatpush1.msra.mxu0 0.0
    %114 = vmatprep.subr.mxu0 0.0
    %115 = vmatpush1.msra.mxu0 0.0
    %116 = vmatprep.subr.mxu0 0.0
    %117 = vmatpush1.msra.mxu0 0.0
    %118 = vmatprep.subr.mxu0 0.0
    %119 = vmatpush1.msra.mxu0 0.0
    %120 = vmatprep.subr.mxu0 0.0
    %121 = vmatpush1.msra.mxu0 0.0
    %122 = vmatprep.subr.mxu0 0.0
    %123 = vmatpush1.msra.mxu0 0.0
    %124 = vmatprep.subr.mxu0 0.0
    %125 = vmatpush1.msra.mxu0 0.0
    %126 = vmatprep.subr.mxu0 0.0
    %127 = vmatpush1.msra.mxu0 0.0
    %128 = vmatprep.subr.mxu0 0.0
    %129 = vmatpush1.msra.mxu0 0.0
    %130 = vmatprep.subr.mxu0 0.0
    %131 = vmatpush1.msra.mxu0 0.0
    %132 = vmatprep.subr.mxu0 0.0
    %133 = vmatpush1.msra.mxu0 0.0
    %134 = vmatprep.subr.mxu0 0.0
    %135 = vmatpush1.msra.mxu0 0.0
    %136 = vmatprep.subr.mxu0 0.0
    %137 = vmatpush1.msra.mxu0 0.0
    %138 = vmatprep.subr.mxu0 0.0
    %139 = vmatpush1.msra.mxu0 0.0
    %140 = vmatprep.subr.mxu0 0.0
    %141 = vmatpush1.msra.mxu0 0.0
    %142 = vmatprep.subr.mxu0 0.0
    %143 = vmatpush1.msra.mxu0 %v37
    %144 = vmatprep.subr.mxu0 0.0
    %145 = vmatpush2.msra.mxu0 0.0
    %146 = vmatprep.subr.mxu0 0.0
    %147 = vmatpush2.msra.mxu0 0.0
    %148 = vmatprep.subr.mxu0 0.0
    %149 = vmatpush2.msra.mxu0 0.0
    %150 = vmatprep.subr.mxu0 0.0
    %151 = vmatpush2.msra.mxu0 0.0
    %152 = vmatprep.subr.mxu0 0.0
    %153 = vmatpush2.msra.mxu0 0.0
    %154 = vmatprep.subr.mxu0 0.0
    %155 = vmatpush2.msra.mxu0 0.0
    %156 = vmatprep.subr.mxu0 0.0
    %157 = vmatpush2.msra.mxu0 0.0
    %158 = vmatprep.subr.mxu0 0.0
    %159 = vmatpush2.msra.mxu0 0.0
    %160 = vmatprep.subr.mxu0 0.0
    %161 = vmatpush2.msra.mxu0 0.0
    %162 = vmatprep.subr.mxu0 0.0
    %163 = vmatpush2.msra.mxu0 0.0
    %164 = vmatprep.subr.mxu0 0.0
    %165 = vmatpush2.msra.mxu0 0.0
    %166 = vmatprep.subr.mxu0 0.0
    %167 = vmatpush2.msra.mxu0 0.0
    %168 = vmatprep.subr.mxu0 0.0
    %169 = vmatpush2.msra.mxu0 0.0
    %170 = vmatprep.subr.mxu0 0.0
    %171 = vmatpush2.msra.mxu0 0.0
    %172 = vmatprep.subr.mxu0 0.0
    %173 = vmatpush2.msra.mxu0 0.0
    %174 = vmatprep.subr.mxu0 0.0
    %175 = vmatpush2.msra.mxu0 0.0
    %176 = vmatprep.mubr.f32.mxu0 0.0
    %177 = vmatmul.mubr.f32.gmra.mxu0 %v89
    %v178 = vpop.f32.mrf.mxu0
    %v179 = vadd.f32 %v50, %v178
    %v180 = vpop.f32.mrf.mxu0
    %181 = vmatprep.mubr.f32.mxu0 0.0
    %182 = vmatmul.mubr.f32.gmra.mxu0 %v92
    %v183 = vpop.f32.mrf.mxu0
    %v184 = vadd.f32 %v55, %v183
    %v185 = vpop.f32.mrf.mxu0
    %186 = vmatprep.mubr.f32.mxu0 0.0
    %187 = vmatmul.mubr.f32.gmra.mxu0 %v95
    %v188 = vpop.f32.mrf.mxu0
    %v189 = vadd.f32 %v60, %v188
    %v190 = vpop.f32.mrf.mxu0
    %191 = vmatprep.mubr.f32.mxu0 0.0
    %192 = vmatmul.mubr.f32.gmra.mxu0 %v98
    %v193 = vpop.f32.mrf.mxu0
    %v194 = vadd.f32 %v65, %v193
    %v195 = vpop.f32.mrf.mxu0
    %196 = vmatprep.mubr.f32.mxu0 0.0
    %197 = vmatmul.mubr.f32.gmra.mxu0 %v101
    %v198 = vpop.f32.mrf.mxu0
    %v199 = vadd.f32 %v70, %v198
    %v200 = vpop.f32.mrf.mxu0
    %201 = vmatprep.mubr.f32.mxu0 0.0
    %202 = vmatmul.mubr.f32.gmra.mxu0 %v104
    %v203 = vpop.f32.mrf.mxu0
    %v204 = vadd.f32 %v75, %v203
    %v205 = vpop.f32.mrf.mxu0
    %206 = vmatprep.mubr.f32.mxu0 0.0
    %207 = vmatmul.mubr.f32.gmra.mxu0 %v107
    %v208 = vpop.f32.mrf.mxu0
    %v209 = vadd.f32 %v80, %v208
    %v210 = vpop.f32.mrf.mxu0
    %211 = vmatprep.mubr.f32.mxu0 0.0
    %212 = vmatmul.mubr.f32.gmra.mxu0 %v110
    %v213 = vpop.f32.mrf.mxu0
    %v214 = vadd.f32 %v85, %v213
    %v215 = vpop.f32.mrf.mxu0
    %216 = vdwg.mxu0
    %v217 = vtanh.pop %v179
    %v218 = vtanh.pop %v184
    %v219 = vtanh.pop %v189
    %v220 = vtanh.pop %v194
    %v221 = vtanh.pop %v199
    %v222 = vtanh.pop %v204
    %v223 = vtanh.pop %v209
    %v224 = vtanh.pop %v214
    %v225 = vld [vmem:[%s2] sm:$0xff]
    %v226 = vld [vmem:[%s2 + $0x8] sm:$0xff]
    %v227 = vld [vmem:[%s2 + $0x10] sm:$0xff]
    %v228 = vld [vmem:[%s2 + $0x18] sm:$0xff]
    %v229 = vld [vmem:[%s2 + $0x20] sm:$0xff]
    %v230 = vld [vmem:[%s2 + $0x28] sm:$0xff]
    %v231 = vld [vmem:[%s2 + $0x30] sm:$0xff]
    %v232 = vld [vmem:[%s2 + $0x38] sm:$0xff]
    %v233 = vld [vmem:[%s2 + $0x40] sm:$0xff]
    %v234 = vld [vmem:[%s2 + $0x48] sm:$0xff]
    %v235 = vld [vmem:[%s2 + $0x50] sm:$0xff]
    %v236 = vld [vmem:[%s2 + $0x58] sm:$0xff]
    %v237 = vld [vmem:[%s2 + $0x60] sm:$0xff]
    %v238 = vld [vmem:[%s2 + $0x68] sm:$0xff]
    %v239 = vld [vmem:[%s2 + $0x70] sm:$0xff]
    %v240 = vld [vmem:[%s2 + $0x78] sm:$0xff]
    %241 = vset.pattern.permute.xlu0 1
    %242 = vperm.xlu0 %241, %v21
    %v243 = vpop.permute.xlu0 %242
    %245 = vset.pattern.permute.xlu0 1
    %246 = vperm.xlu0 %245, %v22
    %v247 = vpop.permute.xlu0 %246
    %249 = vset.pattern.permute.xlu0 1
    %250 = vperm.xlu0 %249, %v23
    %v251 = vpop.permute.xlu0 %250
    %253 = vset.pattern.permute.xlu0 1
    %254 = vperm.xlu0 %253, %v24
    %v255 = vpop.permute.xlu0 %254
    %257 = vset.pattern.permute.xlu0 1
    %258 = vperm.xlu0 %257, %v25
    %v259 = vpop.permute.xlu0 %258
    %261 = vset.pattern.permute.xlu0 1
    %262 = vperm.xlu0 %261, %v26
    %v263 = vpop.permute.xlu0 %262
    %265 = vset.pattern.permute.xlu0 1
    %266 = vperm.xlu0 %265, %v27
    %v267 = vpop.permute.xlu0 %266
    %269 = vset.pattern.permute.xlu0 1
    %270 = vperm.xlu0 %269, %v28
    %v271 = vpop.permute.xlu0 %270
    %274 = vset.pattern.permute.xlu0 1
    %275 = vperm.xlu0 %274, %v29
    %v276 = vpop.permute.xlu0 %275
    %279 = vset.pattern.permute.xlu0 1
    %280 = vperm.xlu0 %279, %v30
    %v281 = vpop.permute.xlu0 %280
    %284 = vset.pattern.permute.xlu0 1
    %285 = vperm.xlu0 %284, %v31
    %v286 = vpop.permute.xlu0 %285
    %289 = vset.pattern.permute.xlu0 1
    %290 = vperm.xlu0 %289, %v32
    %v291 = vpop.permute.xlu0 %290
    %294 = vset.pattern.permute.xlu0 1
    %295 = vperm.xlu0 %294, %v33
    %v296 = vpop.permute.xlu0 %295
    %299 = vset.pattern.permute.xlu0 1
    %300 = vperm.xlu0 %299, %v34
    %v301 = vpop.permute.xlu0 %300
    %304 = vset.pattern.permute.xlu0 1
    %305 = vperm.xlu0 %304, %v35
    %v306 = vpop.permute.xlu0 %305
    %309 = vset.pattern.permute.xlu0 1
    %310 = vperm.xlu0 %309, %v36
    %v311 = vpop.permute.xlu0 %310
    %vm313 = vcmask 523264
    %v315 = vsel %vm313, %v225, 0
    %v318 = vsel %vm313, %v226, 0
    %v321 = vsel %vm313, %v227, 0
    %v324 = vsel %vm313, %v228, 0
    %v327 = vsel %vm313, %v229, 0
    %v330 = vsel %vm313, %v230, 0
    %v333 = vsel %vm313, %v231, 0
    %v336 = vsel %vm313, %v232, 0
    %v339 = vsel %vm313, %v233, 0
    %v342 = vsel %vm313, %v234, 0
    %v345 = vsel %vm313, %v235, 0
    %v348 = vsel %vm313, %v236, 0
    %v351 = vsel %vm313, %v237, 0
    %v354 = vsel %vm313, %v238, 0
    %v357 = vsel %vm313, %v239, 0
    %v360 = vsel %vm313, %v240, 0
    %362 = vmatprep.subr.mxu0 0.0
    %363 = vmatpush1.msra.mxu0 0.0
    %364 = vmatprep.subr.mxu0 0.0
    %365 = vmatpush1.msra.mxu0 0.0
    %366 = vmatprep.subr.mxu0 0.0
    %367 = vmatpush1.msra.mxu0 0.0
    %368 = vmatprep.subr.mxu0 0.0
    %369 = vmatpush1.msra.mxu0 0.0
    %370 = vmatprep.subr.mxu0 0.0
    %371 = vmatpush1.msra.mxu0 0.0
    %372 = vmatprep.subr.mxu0 0.0
    %373 = vmatpush1.msra.mxu0 0.0
    %374 = vmatprep.subr.mxu0 0.0
    %375 = vmatpush1.msra.mxu0 0.0
    %376 = vmatprep.subr.mxu0 0.0
    %377 = vmatpush1.msra.mxu0 0.0
    %378 = vmatprep.subr.mxu0 0.0
    %379 = vmatpush1.msra.mxu0 %v224
    %380 = vmatprep.subr.mxu0 0.0
    %381 = vmatpush1.msra.mxu0 %v223
    %382 = vmatprep.subr.mxu0 0.0
    %383 = vmatpush1.msra.mxu0 %v222
    %384 = vmatprep.subr.mxu0 0.0
    %385 = vmatpush1.msra.mxu0 %v221
    %386 = vmatprep.subr.mxu0 0.0
    %387 = vmatpush1.msra.mxu0 %v220
    %388 = vmatprep.subr.mxu0 0.0
    %389 = vmatpush1.msra.mxu0 %v219
    %390 = vmatprep.subr.mxu0 0.0
    %391 = vmatpush1.msra.mxu0 %v218
    %392 = vmatprep.subr.mxu0 0.0
    %393 = vmatpush1.msra.mxu0 %v217
    %394 = vmatprep.subr.mxu0 0.0
    %395 = vmatpush2.msra.mxu0 0.0
    %396 = vmatprep.subr.mxu0 0.0
    %397 = vmatpush2.msra.mxu0 0.0
    %398 = vmatprep.subr.mxu0 0.0
    %399 = vmatpush2.msra.mxu0 0.0
    %400 = vmatprep.subr.mxu0 0.0
    %401 = vmatpush2.msra.mxu0 0.0
    %402 = vmatprep.subr.mxu0 0.0
    %403 = vmatpush2.msra.mxu0 0.0
    %404 = vmatprep.subr.mxu0 0.0
    %405 = vmatpush2.msra.mxu0 0.0
    %406 = vmatprep.subr.mxu0 0.0
    %407 = vmatpush2.msra.mxu0 0.0
    %408 = vmatprep.subr.mxu0 0.0
    %409 = vmatpush2.msra.mxu0 0.0
    %410 = vmatprep.subr.mxu0 0.0
    %411 = vmatpush2.msra.mxu0 0.0
    %412 = vmatprep.subr.mxu0 0.0
    %413 = vmatpush2.msra.mxu0 0.0
    %414 = vmatprep.subr.mxu0 0.0
    %415 = vmatpush2.msra.mxu0 0.0
    %416 = vmatprep.subr.mxu0 0.0
    %417 = vmatpush2.msra.mxu0 0.0
    %418 = vmatprep.subr.mxu0 0.0
    %419 = vmatpush2.msra.mxu0 0.0
    %420 = vmatprep.subr.mxu0 0.0
    %421 = vmatpush2.msra.mxu0 0.0
    %422 = vmatprep.subr.mxu0 0.0
    %423 = vmatpush2.msra.mxu0 0.0
    %424 = vmatprep.subr.mxu0 0.0
    %425 = vmatpush2.msra.mxu0 0.0
    %426 = vmatprep.mubr.f32.mxu0 0.0
    %427 = vmatmul.mubr.f32.gmra.mxu0 %v315
    %v428 = vpop.f32.mrf.mxu0
    %v429 = vadd.f32 %v243, %v428
    %v430 = vpop.f32.mrf.mxu0
    %431 = vmatprep.mubr.f32.mxu0 0.0
    %432 = vmatmul.mubr.f32.gmra.mxu0 %v318
    %v433 = vpop.f32.mrf.mxu0
    %v434 = vadd.f32 %v247, %v433
    %v435 = vpop.f32.mrf.mxu0
    %436 = vmatprep.mubr.f32.mxu0 0.0
    %437 = vmatmul.mubr.f32.gmra.mxu0 %v321
    %v438 = vpop.f32.mrf.mxu0
    %v439 = vadd.f32 %v251, %v438
    %v440 = vpop.f32.mrf.mxu0
    %441 = vmatprep.mubr.f32.mxu0 0.0
    %442 = vmatmul.mubr.f32.gmra.mxu0 %v324
    %v443 = vpop.f32.mrf.mxu0
    %v444 = vadd.f32 %v255, %v443
    %v445 = vpop.f32.mrf.mxu0
    %446 = vmatprep.mubr.f32.mxu0 0.0
    %447 = vmatmul.mubr.f32.gmra.mxu0 %v327
    %v448 = vpop.f32.mrf.mxu0
    %v449 = vadd.f32 %v259, %v448
    %v450 = vpop.f32.mrf.mxu0
    %451 = vmatprep.mubr.f32.mxu0 0.0
    %452 = vmatmul.mubr.f32.gmra.mxu0 %v330
    %v453 = vpop.f32.mrf.mxu0
    %v454 = vadd.f32 %v263, %v453
    %v455 = vpop.f32.mrf.mxu0
    %456 = vmatprep.mubr.f32.mxu0 0.0
    %457 = vmatmul.mubr.f32.gmra.mxu0 %v333
    %v458 = vpop.f32.mrf.mxu0
    %v459 = vadd.f32 %v267, %v458
    %v460 = vpop.f32.mrf.mxu0
    %461 = vmatprep.mubr.f32.mxu0 0.0
    %462 = vmatmul.mubr.f32.gmra.mxu0 %v336
    %v463 = vpop.f32.mrf.mxu0
    %v464 = vadd.f32 %v271, %v463
    %v465 = vpop.f32.mrf.mxu0
    %466 = vmatprep.mubr.f32.mxu0 0.0
    %467 = vmatmul.mubr.f32.gmra.mxu0 %v339
    %v468 = vpop.f32.mrf.mxu0
    %v469 = vadd.f32 %v276, %v468
    %v470 = vpop.f32.mrf.mxu0
    %471 = vmatprep.mubr.f32.mxu0 0.0
    %472 = vmatmul.mubr.f32.gmra.mxu0 %v342
    %v473 = vpop.f32.mrf.mxu0
    %v474 = vadd.f32 %v281, %v473
    %v475 = vpop.f32.mrf.mxu0
    %476 = vmatprep.mubr.f32.mxu0 0.0
    %477 = vmatmul.mubr.f32.gmra.mxu0 %v345
    %v478 = vpop.f32.mrf.mxu0
    %v479 = vadd.f32 %v286, %v478
    %v480 = vpop.f32.mrf.mxu0
    %481 = vmatprep.mubr.f32.mxu0 0.0
    %482 = vmatmul.mubr.f32.gmra.mxu0 %v348
    %v483 = vpop.f32.mrf.mxu0
    %v484 = vadd.f32 %v291, %v483
    %v485 = vpop.f32.mrf.mxu0
    %486 = vmatprep.mubr.f32.mxu0 0.0
    %487 = vmatmul.mubr.f32.gmra.mxu0 %v351
    %v488 = vpop.f32.mrf.mxu0
    %v489 = vadd.f32 %v296, %v488
    %v490 = vpop.f32.mrf.mxu0
    %491 = vmatprep.mubr.f32.mxu0 0.0
    %492 = vmatmul.mubr.f32.gmra.mxu0 %v354
    %v493 = vpop.f32.mrf.mxu0
    %v494 = vadd.f32 %v301, %v493
    %v495 = vpop.f32.mrf.mxu0
    %496 = vmatprep.mubr.f32.mxu0 0.0
    %497 = vmatmul.mubr.f32.gmra.mxu0 %v357
    %v498 = vpop.f32.mrf.mxu0
    %v499 = vadd.f32 %v306, %v498
    %v500 = vpop.f32.mrf.mxu0
    %501 = vmatprep.mubr.f32.mxu0 0.0
    %502 = vmatmul.mubr.f32.gmra.mxu0 %v360
    %v503 = vpop.f32.mrf.mxu0
    %v504 = vadd.f32 %v311, %v503
    %v505 = vpop.f32.mrf.mxu0
    %506 = vdwg.mxu0
    %v507 = vtanh.pop %v429
    %v508 = vtanh.pop %v434
    %v509 = vtanh.pop %v439
    %v510 = vtanh.pop %v444
    %v511 = vtanh.pop %v449
    %v512 = vtanh.pop %v454
    %v513 = vtanh.pop %v459
    %v514 = vtanh.pop %v464
    %v515 = vtanh.pop %v469
    %v516 = vtanh.pop %v474
    %v517 = vtanh.pop %v479
    %v518 = vtanh.pop %v484
    %v519 = vtanh.pop %v489
    %v520 = vtanh.pop %v494
    %v521 = vtanh.pop %v499
    %v522 = vtanh.pop %v504
    %v523 = vld [vmem:[%s3] sm:$0xff]
    %524 = vset.pattern.permute.xlu0 2
    %525 = vperm.xlu0 %524, %v21
    %v526 = vpop.permute.xlu0 %525
    %528 = vmatprep.subr.mxu0 0.0
    %529 = vmatpush1.msra.mxu0 %v522
    %530 = vmatprep.subr.mxu0 0.0
    %531 = vmatpush1.msra.mxu0 %v521
    %532 = vmatprep.subr.mxu0 0.0
    %533 = vmatpush1.msra.mxu0 %v520
    %534 = vmatprep.subr.mxu0 0.0
    %535 = vmatpush1.msra.mxu0 %v519
    %536 = vmatprep.subr.mxu0 0.0
    %537 = vmatpush1.msra.mxu0 %v518
    %538 = vmatprep.subr.mxu0 0.0
    %539 = vmatpush1.msra.mxu0 %v517
    %540 = vmatprep.subr.mxu0 0.0
    %541 = vmatpush1.msra.mxu0 %v516
    %542 = vmatprep.subr.mxu0 0.0
    %543 = vmatpush1.msra.mxu0 %v515
    %544 = vmatprep.subr.mxu0 0.0
    %545 = vmatpush1.msra.mxu0 %v514
    %546 = vmatprep.subr.mxu0 0.0
    %547 = vmatpush1.msra.mxu0 %v513
    %548 = vmatprep.subr.mxu0 0.0
    %549 = vmatpush1.msra.mxu0 %v512
    %550 = vmatprep.subr.mxu0 0.0
    %551 = vmatpush1.msra.mxu0 %v511
    %552 = vmatprep.subr.mxu0 0.0
    %553 = vmatpush1.msra.mxu0 %v510
    %554 = vmatprep.subr.mxu0 0.0
    %555 = vmatpush1.msra.mxu0 %v509
    %556 = vmatprep.subr.mxu0 0.0
    %557 = vmatpush1.msra.mxu0 %v508
    %558 = vmatprep.subr.mxu0 0.0
    %559 = vmatpush1.msra.mxu0 %v507
    %560 = vmatprep.subr.mxu0 0.0
    %561 = vmatpush2.msra.mxu0 0.0
    %562 = vmatprep.subr.mxu0 0.0
    %563 = vmatpush2.msra.mxu0 0.0
    %564 = vmatprep.subr.mxu0 0.0
    %565 = vmatpush2.msra.mxu0 0.0
    %566 = vmatprep.subr.mxu0 0.0
    %567 = vmatpush2.msra.mxu0 0.0
    %568 = vmatprep.subr.mxu0 0.0
    %569 = vmatpush2.msra.mxu0 0.0
    %570 = vmatprep.subr.mxu0 0.0
    %571 = vmatpush2.msra.mxu0 0.0
    %572 = vmatprep.subr.mxu0 0.0
    %573 = vmatpush2.msra.mxu0 0.0
    %574 = vmatprep.subr.mxu0 0.0
    %575 = vmatpush2.msra.mxu0 0.0
    %576 = vmatprep.subr.mxu0 0.0
    %577 = vmatpush2.msra.mxu0 0.0
    %578 = vmatprep.subr.mxu0 0.0
    %579 = vmatpush2.msra.mxu0 0.0
    %580 = vmatprep.subr.mxu0 0.0
    %581 = vmatpush2.msra.mxu0 0.0
    %582 = vmatprep.subr.mxu0 0.0
    %583 = vmatpush2.msra.mxu0 0.0
    %584 = vmatprep.subr.mxu0 0.0
    %585 = vmatpush2.msra.mxu0 0.0
    %586 = vmatprep.subr.mxu0 0.0
    %587 = vmatpush2.msra.mxu0 0.0
    %588 = vmatprep.subr.mxu0 0.0
    %589 = vmatpush2.msra.mxu0 0.0
    %590 = vmatprep.subr.mxu0 0.0
    %591 = vmatpush2.msra.mxu0 0.0
    %592 = vmatprep.mubr.f32.mxu0 0.0
    %593 = vmatmul.mubr.f32.gmra.mxu0 %v523
    %v594 = vpop.f32.mrf.mxu0
    %v595 = vadd.f32 %v526, %v594
    %v596 = vpop.f32.mrf.mxu0
    %597 = vdwg.mxu0
    %v598 = vtanh.pop %v595
    %599 = vset.pattern.permute.xlu0 4
    %600 = vperm.xlu0 %599, %v21
    %v601 = vpop.permute.xlu0 %600
    %v603 = vmul.f32 %v38, %v601
    %604 = vset.pattern.permute.xlu0 5
    %605 = vperm.xlu0 %604, %v21
    %v606 = vpop.permute.xlu0 %605
    %v608 = vadd.f32 %v603, %v606
    %v609 = vsub.f32 %v608, %v598
    %v610 = vmul.f32 %v609, %v609
    %611 = vset.pattern.permute.xlu0 3
    %612 = vperm.xlu0 %611, %v21
    %v613 = vpop.permute.xlu0 %612
    %v615 = vmul.f32 %v610, %v613
    %vm616 = vcmask 1043456
    %v617 = vsel %vm616, %v615, 0.0
    %v618 = vrot.slane %v617, 4
    %v619 = vadd.f32 %v617, %v618
    %v620 = vrot.slane %v619, 2
    %v621 = vadd.f32 %v619, %v620
    %v622 = vrot.slane %v621, 1
    %v623 = vadd.f32 %v621, %v622
    %v624 = vsub.f32 0.0, %v623
    %625 = vset.pattern.permute.xlu0 6
    %626 = vperm.xlu0 %625, %v21
    %v627 = vpop.permute.xlu0 %626
    %v629 = vsub.f32 %v624, %v627
    %630 = vst [vmem:[#allocation2] sm:$0x1] %v629
    %631 = vst [vmem:[#allocation2 - $0x3] sm:$0x10] %v595
    // Predicated region
    $region22: #{tpu_custom_call.1} parent=1 // pred_check
      _
    $region23: #{tpu_custom_call.1} parent=1 // pred_check_branch
      %633 = sbr.rel (0) target = $region25
    $region24: #{tpu_custom_call.1} parent=1 // pred_region
      %s635 = ssub.s32 32, 32
      %636 = vsyncadd [#allocation3], %s635
      %s638 = sshll.u32 [#allocation2], 4
      %s639 = int_to_ptr.vmem [resolvable:$true] %s638
      %641 = dma.vmem_to_hbm [thread:$0]  %s639, 32, %s5, [#allocation3]
    $region25: #{tpu_custom_call.1} parent=1 // pred_fallthru
      _
    // Predicated region
    $region26: #{tpu_custom_call.1} parent=1 // pred_check
      _
    $region27: #{tpu_custom_call.1} parent=1 // pred_check_branch
      %643 = sbr.rel (0) target = $region29
    $region28: #{tpu_custom_call.1} parent=1 // pred_region
      %644 = dma.done [#allocation3], 32
    $region29: #{tpu_custom_call.1} parent=1 // pred_fallthru
      _
    %645 = vsyncpa [#allocation3], 1

</llo_original>
